<compile_context>
chip_gen: v6e
topology: v6e:2x2x1
jax: 0.10.0
libtpu: 0.0.40
codegen_flags: <defaults>
</compile_context>

<pallas_src>
import functools

import jax
import jax.numpy as jnp
from jax.experimental import pallas as pl
from jax.experimental.pallas import tpu as pltpu


def mil_encoder_kernel(x_ref, w_blk_ref, b_blk_ref,
                       w1_ref, b1_ref, w2_ref, b2_ref, out_ref,
                       *, num_partitions, encoder_dim, compute_dtype):
    M, D = num_partitions, encoder_dim

    # ---- fused shared encoder: one block-diagonal matmul over all partitions.
    x = x_ref[...].astype(compute_dtype)                 # (TILE_B, M*P)
    w_blk = w_blk_ref[...].astype(compute_dtype)         # (M*P, M*D)
    enc = jnp.dot(x, w_blk, preferred_element_type=jnp.float32) + b_blk_ref[...]
    # enc: (TILE_B, M*D) f32, chunk m (lanes [m*D, (m+1)*D)) == Linear(partition m)

    # ---- per-partition L2 normalize (F.normalize dim=2) + deepset sum pooling.
    pooled = jnp.zeros((enc.shape[0], D), jnp.float32)
    for m in range(M):                                   # static unroll, M is tiny
        e = enc[:, m * D:(m + 1) * D]                    # (TILE_B, D)
        sq = jnp.sum(e * e, axis=-1, keepdims=True)      # (TILE_B, 1)
        # rsqrt(max(sq, eps^2)) == 1 / max(||e||, eps)  -> F.normalize semantics
        inv = jax.lax.rsqrt(jnp.maximum(sq, 1e-24))
        pooled = pooled + e * inv

    # ---- fusion MLP: Linear(D->H) -> ReLU -> Linear(H->O)
    h = jnp.dot(pooled.astype(compute_dtype), w1_ref[...].astype(compute_dtype),
                preferred_element_type=jnp.float32)
    h = jnp.maximum(h + b1_ref[...], 0.0)                # (TILE_B, H) f32
    out = jnp.dot(h.astype(compute_dtype), w2_ref[...].astype(compute_dtype),
                  preferred_element_type=jnp.float32) + b2_ref[...]
    out_ref[...] = out.astype(out_ref.dtype)             # (TILE_B, O)


def _round_up(x, m):
    return ((x + m - 1) // m) * m


def mil_encoder(x, params, num_partitions, partition_size,
                *, tile_b=2048, min_grid_steps=4, compute_dtype=jnp.bfloat16):
    B, F = x.shape
    M, P = num_partitions, partition_size
    assert F == M * P, "partition sizes should sum to the input size"
    D = params["w_enc"].shape[1]
    H = params["w1"].shape[1]
    O = params["w2"].shape[1]

    # Fused block-diagonal shared-encoder weight/bias (built once per call; tiny).
    w_blk = jax.scipy.linalg.block_diag(*([params["w_enc"]] * M))  # (M*P, M*D)
    b_blk = jnp.tile(params["b_enc"], (1, M))                      # (1, M*D)

    # Batch tile: big enough to amortize the ~0.35 us/step overhead, small enough
    # to leave >= min_grid_steps steps so both v7x TensorCores get work and DMA
    # overlaps compute.  Always a multiple of 8 (sublanes); batch is zero-padded.
    TILE_B = min(tile_b, max(8, _round_up(pl.cdiv(B, min_grid_steps), 8)))
    B_pad = _round_up(B, TILE_B)
    x_in = jnp.pad(x, ((0, B_pad - B), (0, 0))) if B_pad != B else x

    kernel = functools.partial(
        mil_encoder_kernel,
        num_partitions=M, encoder_dim=D, compute_dtype=compute_dtype)

    # Weights/biases: full-extent blocks with a constant index_map -> VMEM-resident.
    pinned = lambda shape: pl.BlockSpec(shape, lambda i: (0, 0))

    out = pl.pallas_call(
        kernel,
        out_shape=jax.ShapeDtypeStruct((B_pad, O), x.dtype),
        grid=(B_pad // TILE_B,),
        in_specs=[
            pl.BlockSpec((TILE_B, M * P), lambda i: (i, 0)),       # x: batch-tiled
            pinned((M * P, M * D)), pinned((1, M * D)),            # fused encoder
            pinned((D, H)), pinned((1, H)),                        # mlp layer 1
            pinned((H, O)), pinned((1, O)),                        # mlp layer 2
        ],
        out_specs=pl.BlockSpec((TILE_B, O), lambda i: (i, 0)),
        compiler_params=pltpu.CompilerParams(
            dimension_semantics=("parallel",)),         # batch tiles are independent
    )(x_in, w_blk, b_blk,
      params["w1"], params["b1"], params["w2"], params["b2"])

    return out[:B] if B_pad != B else out


def init_params(key, P, D, H, O):
    ks = jax.random.split(key, 6)
    scale = 0.1
    return {
        "w_enc": scale * jax.random.normal(ks[0], (P, D), jnp.float32),
        "b_enc": scale * jax.random.normal(ks[1], (1, D), jnp.float32),
        "w1":    scale * jax.random.normal(ks[2], (D, H), jnp.float32),
        "b1":    scale * jax.random.normal(ks[3], (1, H), jnp.float32),
        "w2":    scale * jax.random.normal(ks[4], (H, O), jnp.float32),
        "b2":    scale * jax.random.normal(ks[5], (1, O), jnp.float32),
    }


def mil_encoder_reference(x, params, M, P):
    """Pure-JAX reference mirroring the PyTorch forward pass."""
    B = x.shape[0]
    parts = x.reshape(B, M, P)                                     # torch.split dim=1
    enc = parts @ params["w_enc"] + params["b_enc"]                # shared encoder
    norm = jnp.sqrt(jnp.sum(enc * enc, axis=-1, keepdims=True))
    normed = enc / jnp.maximum(norm, 1e-12)                        # F.normalize dim=2
    pooled = normed.sum(axis=1)                                    # torch.sum(dim=1)
    h = jnp.maximum(pooled @ params["w1"] + params["b1"], 0.0)     # mlp
    return h @ params["w2"] + params["b2"]


if __name__ == "__main__":
    key = jax.random.PRNGKey(0)
    k_x, k_p, k_x2 = jax.random.split(key, 3)

    partition_sizes = [8, 8, 8]          # M = 3 partitions of width P = 8
    M, P = len(partition_sizes), partition_sizes[0]
    D, H, O = 32, 64, 16                 # shared_encoder_dim, mlp hidden, mlp out
    params = init_params(k_p, P, D, H, O)

    # --- small shape from the module spec (B = 2): single padded 8-row block.
    B = 2
    x = jax.random.normal(k_x, (B, sum(partition_sizes)), jnp.float32)
    out = jax.block_until_ready(mil_encoder(x, params, M, P))
    ref = mil_encoder_reference(x, params, M, P)
    assert out.shape == (B, O)
    assert jnp.allclose(out, ref, rtol=1e-3, atol=2e-3), "small-batch mismatch"

    # --- exercise the multi-step batch-tiled grid + padding path.
    B2 = 40
    x2 = jax.random.normal(k_x2, (B2, sum(partition_sizes)), jnp.float32)
    out2 = jax.block_until_ready(mil_encoder(x2, params, M, P, tile_b=16))
    ref2 = mil_encoder_reference(x2, params, M, P)
    assert out2.shape == (B2, O)
    assert jnp.allclose(out2, ref2, rtol=1e-3, atol=2e-3), "tiled-batch mismatch"

    # TODO(synk): apply_attention=True / TransformerEncoder pooling variants of
    # DeepsetFusionModule are not implemented (this config disables them).
    print("KERNEL_OK")
</pallas_src>

<mosaic_0001>
module attributes {stable_mosaic.version = 11 : i64} {
  func.func @mil_encoder_kernel(%arg0: i32, %arg1: memref<8x24xf32, #tpu.memory_space<vmem>>, %arg2: memref<24x96xf32, #tpu.memory_space<vmem>>, %arg3: memref<1x96xf32, #tpu.memory_space<vmem>>, %arg4: memref<32x64xf32, #tpu.memory_space<vmem>>, %arg5: memref<1x64xf32, #tpu.memory_space<vmem>>, %arg6: memref<64x16xf32, #tpu.memory_space<vmem>>, %arg7: memref<1x16xf32, #tpu.memory_space<vmem>>, %arg8: memref<8x16xf32, #tpu.memory_space<vmem>>) attributes {dimension_semantics = [#tpu.dimension_semantics<parallel>], iteration_bounds = array<i64: 1>, scalar_prefetch = 0 : i64, scratch_operands = 0 : i64, tpu.core_type = #tpu.core_type<tc>, window_params = [{transform_indices = @transform_0, window_bounds = array<i64: 8, 24>}, {pipeline_mode = #tpu.pipeline_mode<synchronous>, transform_indices = @transform_1, window_bounds = array<i64: 24, 96>}, {pipeline_mode = #tpu.pipeline_mode<synchronous>, transform_indices = @transform_2, window_bounds = array<i64: 1, 96>}, {pipeline_mode = #tpu.pipeline_mode<synchronous>, transform_indices = @transform_3, window_bounds = array<i64: 32, 64>}, {pipeline_mode = #tpu.pipeline_mode<synchronous>, transform_indices = @transform_4, window_bounds = array<i64: 1, 64>}, {pipeline_mode = #tpu.pipeline_mode<synchronous>, transform_indices = @transform_5, window_bounds = array<i64: 64, 16>}, {pipeline_mode = #tpu.pipeline_mode<synchronous>, transform_indices = @transform_6, window_bounds = array<i64: 1, 16>}, {transform_indices = @transform_7, window_bounds = array<i64: 8, 16>}]} {
    %c0 = arith.constant 0 : index
    %c0_0 = arith.constant 0 : index
    %0 = vector.load %arg1[%c0, %c0_0] : memref<8x24xf32, #tpu.memory_space<vmem>>, vector<8x24xf32>
    %1 = arith.truncf %0 : vector<8x24xf32> to vector<8x24xbf16>
    %c0_1 = arith.constant 0 : index
    %c0_2 = arith.constant 0 : index
    %2 = vector.load %arg2[%c0_1, %c0_2] : memref<24x96xf32, #tpu.memory_space<vmem>>, vector<24x96xf32>
    %3 = arith.truncf %2 : vector<24x96xf32> to vector<24x96xbf16>
    %cst = arith.constant dense<0.000000e+00> : vector<8x96xf32>
    %4 = tpu.matmul %1, %3, %cst {dimension_numbers = #tpu.dot_dimension_numbers<[1], [0], [0], [1], [0, 0, 1, 1], [], []>} : vector<8x24xbf16>, vector<24x96xbf16>, vector<8x96xf32> -> vector<8x96xf32>
    %c0_3 = arith.constant 0 : index
    %c0_4 = arith.constant 0 : index
    %5 = vector.load %arg3[%c0_3, %c0_4] : memref<1x96xf32, #tpu.memory_space<vmem>>, vector<1x96xf32>
    %6 = vector.broadcast %5 : vector<1x96xf32> to vector<8x96xf32>
    %7 = arith.addf %4, %6 : vector<8x96xf32>
    %cst_5 = arith.constant 0.000000e+00 : f32
    %8 = vector.broadcast %cst_5 : f32 to vector<8x32xf32>
    %9 = vector.extract_strided_slice %7 {offsets = [0, 0], sizes = [8, 32], strides = [1, 1]} : vector<8x96xf32> to vector<8x32xf32>
    %10 = arith.mulf %9, %9 : vector<8x32xf32>
    %cst_6 = arith.constant dense<0.000000e+00> : vector<8xf32>
    %11 = vector.multi_reduction <add>, %10, %cst_6 [1] : vector<8x32xf32> to vector<8xf32>
    %12 = vector.shape_cast %11 : vector<8xf32> to vector<8x1xf32>
    %cst_7 = arith.constant 1.000000e-24 : f32
    %13 = vector.broadcast %cst_7 : f32 to vector<8x1xf32>
    %14 = arith.maximumf %12, %13 : vector<8x1xf32>
    %15 = math.rsqrt %14 : vector<8x1xf32>
    %16 = vector.broadcast %15 : vector<8x1xf32> to vector<8x32xf32>
    %17 = arith.mulf %9, %16 : vector<8x32xf32>
    %18 = arith.addf %8, %17 : vector<8x32xf32>
    %19 = vector.extract_strided_slice %7 {offsets = [0, 32], sizes = [8, 32], strides = [1, 1]} : vector<8x96xf32> to vector<8x32xf32>
    %20 = arith.mulf %19, %19 : vector<8x32xf32>
    %cst_8 = arith.constant dense<0.000000e+00> : vector<8xf32>
    %21 = vector.multi_reduction <add>, %20, %cst_8 [1] : vector<8x32xf32> to vector<8xf32>
    %22 = vector.shape_cast %21 : vector<8xf32> to vector<8x1xf32>
    %cst_9 = arith.constant 1.000000e-24 : f32
    %23 = vector.broadcast %cst_9 : f32 to vector<8x1xf32>
    %24 = arith.maximumf %22, %23 : vector<8x1xf32>
    %25 = math.rsqrt %24 : vector<8x1xf32>
    %26 = vector.broadcast %25 : vector<8x1xf32> to vector<8x32xf32>
    %27 = arith.mulf %19, %26 : vector<8x32xf32>
    %28 = arith.addf %18, %27 : vector<8x32xf32>
    %29 = vector.extract_strided_slice %7 {offsets = [0, 64], sizes = [8, 32], strides = [1, 1]} : vector<8x96xf32> to vector<8x32xf32>
    %30 = arith.mulf %29, %29 : vector<8x32xf32>
    %cst_10 = arith.constant dense<0.000000e+00> : vector<8xf32>
    %31 = vector.multi_reduction <add>, %30, %cst_10 [1] : vector<8x32xf32> to vector<8xf32>
    %32 = vector.shape_cast %31 : vector<8xf32> to vector<8x1xf32>
    %cst_11 = arith.constant 1.000000e-24 : f32
    %33 = vector.broadcast %cst_11 : f32 to vector<8x1xf32>
    %34 = arith.maximumf %32, %33 : vector<8x1xf32>
    %35 = math.rsqrt %34 : vector<8x1xf32>
    %36 = vector.broadcast %35 : vector<8x1xf32> to vector<8x32xf32>
    %37 = arith.mulf %29, %36 : vector<8x32xf32>
    %38 = arith.addf %28, %37 : vector<8x32xf32>
    %39 = arith.truncf %38 : vector<8x32xf32> to vector<8x32xbf16>
    %c0_12 = arith.constant 0 : index
    %c0_13 = arith.constant 0 : index
    %40 = vector.load %arg4[%c0_12, %c0_13] : memref<32x64xf32, #tpu.memory_space<vmem>>, vector<32x64xf32>
    %41 = arith.truncf %40 : vector<32x64xf32> to vector<32x64xbf16>
    %cst_14 = arith.constant dense<0.000000e+00> : vector<8x64xf32>
    %42 = tpu.matmul %39, %41, %cst_14 {dimension_numbers = #tpu.dot_dimension_numbers<[1], [0], [0], [1], [0, 0, 1, 1], [], []>} : vector<8x32xbf16>, vector<32x64xbf16>, vector<8x64xf32> -> vector<8x64xf32>
    %c0_15 = arith.constant 0 : index
    %c0_16 = arith.constant 0 : index
    %43 = vector.load %arg5[%c0_15, %c0_16] : memref<1x64xf32, #tpu.memory_space<vmem>>, vector<1x64xf32>
    %44 = vector.broadcast %43 : vector<1x64xf32> to vector<8x64xf32>
    %45 = arith.addf %42, %44 : vector<8x64xf32>
    %cst_17 = arith.constant 0.000000e+00 : f32
    %46 = vector.broadcast %cst_17 : f32 to vector<8x64xf32>
    %47 = arith.maximumf %45, %46 : vector<8x64xf32>
    %48 = arith.truncf %47 : vector<8x64xf32> to vector<8x64xbf16>
    %c0_18 = arith.constant 0 : index
    %c0_19 = arith.constant 0 : index
    %49 = vector.load %arg6[%c0_18, %c0_19] : memref<64x16xf32, #tpu.memory_space<vmem>>, vector<64x16xf32>
    %50 = arith.truncf %49 : vector<64x16xf32> to vector<64x16xbf16>
    %cst_20 = arith.constant dense<0.000000e+00> : vector<8x16xf32>
    %51 = tpu.matmul %48, %50, %cst_20 {dimension_numbers = #tpu.dot_dimension_numbers<[1], [0], [0], [1], [0, 0, 1, 1], [], []>} : vector<8x64xbf16>, vector<64x16xbf16>, vector<8x16xf32> -> vector<8x16xf32>
    %c0_21 = arith.constant 0 : index
    %c0_22 = arith.constant 0 : index
    %52 = vector.load %arg7[%c0_21, %c0_22] : memref<1x16xf32, #tpu.memory_space<vmem>>, vector<1x16xf32>
    %53 = vector.broadcast %52 : vector<1x16xf32> to vector<8x16xf32>
    %54 = arith.addf %51, %53 : vector<8x16xf32>
    %c0_23 = arith.constant 0 : index
    %c0_24 = arith.constant 0 : index
    %55 = vector.load %arg8[%c0_23, %c0_24] : memref<8x16xf32, #tpu.memory_space<vmem>>, vector<8x16xf32>
    tpu.vector_store %arg8[%c0_23, %c0_24], %54 {strides = array<i32>} : memref<8x16xf32, #tpu.memory_space<vmem>>, vector<8x16xf32>,
    return
  }
  func.func @transform_0(%arg0: i32) -> (i32, i32) {
    %c0_i32 = arith.constant 0 : i32
    %c0_i32_0 = arith.constant 0 : i32
    return %arg0, %c0_i32 : i32, i32
  }
  func.func @transform_1(%arg0: i32) -> (i32, i32) {
    %c0_i32 = arith.constant 0 : i32
    %c0_i32_0 = arith.constant 0 : i32
    %c0_i32_1 = arith.constant 0 : i32
    return %c0_i32, %c0_i32_0 : i32, i32
  }
  func.func @transform_2(%arg0: i32) -> (i32, i32) {
    %c0_i32 = arith.constant 0 : i32
    %c0_i32_0 = arith.constant 0 : i32
    %c0_i32_1 = arith.constant 0 : i32
    return %c0_i32, %c0_i32_0 : i32, i32
  }
  func.func @transform_3(%arg0: i32) -> (i32, i32) {
    %c0_i32 = arith.constant 0 : i32
    %c0_i32_0 = arith.constant 0 : i32
    %c0_i32_1 = arith.constant 0 : i32
    return %c0_i32, %c0_i32_0 : i32, i32
  }
  func.func @transform_4(%arg0: i32) -> (i32, i32) {
    %c0_i32 = arith.constant 0 : i32
    %c0_i32_0 = arith.constant 0 : i32
    %c0_i32_1 = arith.constant 0 : i32
    return %c0_i32, %c0_i32_0 : i32, i32
  }
  func.func @transform_5(%arg0: i32) -> (i32, i32) {
    %c0_i32 = arith.constant 0 : i32
    %c0_i32_0 = arith.constant 0 : i32
    %c0_i32_1 = arith.constant 0 : i32
    return %c0_i32, %c0_i32_0 : i32, i32
  }
  func.func @transform_6(%arg0: i32) -> (i32, i32) {
    %c0_i32 = arith.constant 0 : i32
    %c0_i32_0 = arith.constant 0 : i32
    %c0_i32_1 = arith.constant 0 : i32
    return %c0_i32, %c0_i32_0 : i32, i32
  }
  func.func @transform_7(%arg0: i32) -> (i32, i32) {
    %c0_i32 = arith.constant 0 : i32
    %c0_i32_0 = arith.constant 0 : i32
    return %arg0, %c0_i32 : i32, i32
  }
}

</mosaic_0001>

<llo_original>
// kernel: tpu_custom_call.1
$region0: #{tpu_custom_call.1}
  #allocation0 [shape = 'u32[]', space=smem, size = 0x4, offset = 0x4, fixed_abs, tag = 'smem constant byte address 0x4 - core index']
  #allocation1 [shape = 'u32[144,128]{1,0:T(1,128)}', space=vmem, size = 0x12000, scoped, tag = 'internal scratch']
  %s0 = inlined_call_operand.vmem [shape: f32[8,24], index: 0, kind: input, shape index: {}]
  %s1 = inlined_call_operand.vmem [shape: f32[24,96], index: 1, kind: input, shape index: {}]
  %s2 = inlined_call_operand.vmem [shape: f32[1,96], index: 2, kind: input, shape index: {}]
  %s3 = inlined_call_operand.vmem [shape: f32[32,64], index: 3, kind: input, shape index: {}]
  %s4 = inlined_call_operand.vmem [shape: f32[1,64], index: 4, kind: input, shape index: {}]
  %s5 = inlined_call_operand.vmem [shape: f32[64,16], index: 5, kind: input, shape index: {}]
  %s6 = inlined_call_operand.vmem [shape: f32[1,16], index: 6, kind: input, shape index: {}]
  %s7 = inlined_call_operand.hbm [shape: f32[8,16], index: 7, kind: output, shape index: {}]
  %s8 = sld [smem:[#allocation0]]
  $region38: #{tpu_custom_call.1} parent=0
    _
  %s10 = ssub.s32 1, %s8
  %s11 = scalar_select 0, %s10, %s8
  $region1: #{tpu_custom_call.1} parent=0
    #allocation2 [shape = 'u8[4096]{0}', space=vmem, size = 0x1000, scoped, tag = 'output window, operand 0, single buffered']
    #allocation3 [shape = 's32[1]{0}', space=sflag, size = 0x4, scoped, tag = 'scoped memory for tpu_custom_call.1']
    %12 = vsyncpa [#allocation3], 0
    // Predicated region
    $region2: #{tpu_custom_call.1} parent=1 // pred_check
      _
    $region3: #{tpu_custom_call.1} parent=1 // pred_check_branch
      %14 = sbr.rel (0) target = $region5
    $region4: #{tpu_custom_call.1} parent=1 // pred_region
      _
    $region5: #{tpu_custom_call.1} parent=1 // pred_fallthru
      _
    // Predicated region
    $region6: #{tpu_custom_call.1} parent=1 // pred_check
      _
    $region7: #{tpu_custom_call.1} parent=1 // pred_check_branch
      %16 = sbr.rel (0) target = $region9
    $region8: #{tpu_custom_call.1} parent=1 // pred_region
      _
    $region9: #{tpu_custom_call.1} parent=1 // pred_fallthru
      _
    // Predicated region
    $region10: #{tpu_custom_call.1} parent=1 // pred_check
      _
    $region11: #{tpu_custom_call.1} parent=1 // pred_check_branch
      %18 = sbr.rel (0) target = $region13
    $region12: #{tpu_custom_call.1} parent=1 // pred_region
      _
    $region13: #{tpu_custom_call.1} parent=1 // pred_fallthru
      _
    // Predicated region
    $region14: #{tpu_custom_call.1} parent=1 // pred_check
      _
    $region15: #{tpu_custom_call.1} parent=1 // pred_check_branch
      %20 = sbr.rel (0) target = $region17
    $region16: #{tpu_custom_call.1} parent=1 // pred_region
      _
    $region17: #{tpu_custom_call.1} parent=1 // pred_fallthru
      _
    // Predicated region
    $region18: #{tpu_custom_call.1} parent=1 // pred_check
      _
    $region19: #{tpu_custom_call.1} parent=1 // pred_check_branch
      %22 = sbr.rel (0) target = $region21
    $region20: #{tpu_custom_call.1} parent=1 // pred_region
      _
    $region21: #{tpu_custom_call.1} parent=1 // pred_fallthru
      _
    // Predicated region
    $region22: #{tpu_custom_call.1} parent=1 // pred_check
      _
    $region23: #{tpu_custom_call.1} parent=1 // pred_check_branch
      %24 = sbr.rel (0) target = $region25
    $region24: #{tpu_custom_call.1} parent=1 // pred_region
      _
    $region25: #{tpu_custom_call.1} parent=1 // pred_fallthru
      _
    // Predicated region
    $region26: #{tpu_custom_call.1} parent=1 // pred_check
      _
    $region27: #{tpu_custom_call.1} parent=1 // pred_check_branch
      %26 = sbr.rel (0) target = $region29
    $region28: #{tpu_custom_call.1} parent=1 // pred_region
      _
    $region29: #{tpu_custom_call.1} parent=1 // pred_fallthru
      _
    %v28 = vld [vmem:[%s0] sm:$0xff]
    %v29 = vpack.c.bf16 %v28, %v28
    %v30 = vld [vmem:[%s1] sm:$0xff]
    %v31 = vld [vmem:[%s1 + $0x8] sm:$0xff]
    %v32 = vld [vmem:[%s1 + $0x10] sm:$0xff]
    %v33 = vpack.c.bf16 %v31, %v30
    %v34 = vpack.c.bf16 %v32, %v32
    %v35 = vld [vmem:[%s2] sm:$0x1]
    %v37 = vlaneseq
    %v38 = vshrl.u32 %v37, 7
    %v39 = vsub.s32 0, %v38
    %v40 = vrot.slane %v35, %v39
    %vm42 = vcmask 195584
    %v44 = vsel %vm42, %v29, 0
    %vm46 = vcmask 1043456
    %v48 = vsel %vm46, %v34, 0
    %50 = vmatprep.subr.bf16.mxu0 0
    %51 = vmatpush1.bf16.msra.mxu0 0
    %52 = vmatprep.subr.bf16.mxu0 0
    %53 = vmatpush1.bf16.msra.mxu0 0
    %54 = vmatprep.subr.bf16.mxu0 0
    %55 = vmatpush1.bf16.msra.mxu0 0
    %56 = vmatprep.subr.bf16.mxu0 0
    %57 = vmatpush1.bf16.msra.mxu0 0
    %58 = vmatprep.subr.bf16.mxu0 0
    %59 = vmatpush1.bf16.msra.mxu0 0
    %60 = vmatprep.subr.bf16.mxu0 0
    %61 = vmatpush1.bf16.msra.mxu0 0
    %62 = vmatprep.subr.bf16.mxu0 0
    %63 = vmatpush1.bf16.msra.mxu0 %v48
    %64 = vmatprep.subr.bf16.mxu0 0
    %65 = vmatpush1.bf16.msra.mxu0 %v33
    %66 = vmatprep.subr.bf16.mxu0 0
    %67 = vmatpush2.bf16.msra.mxu0 0
    %68 = vmatprep.subr.bf16.mxu0 0
    %69 = vmatpush2.bf16.msra.mxu0 0
    %70 = vmatprep.subr.bf16.mxu0 0
    %71 = vmatpush2.bf16.msra.mxu0 0
    %72 = vmatprep.subr.bf16.mxu0 0
    %73 = vmatpush2.bf16.msra.mxu0 0
    %74 = vmatprep.subr.bf16.mxu0 0
    %75 = vmatpush2.bf16.msra.mxu0 0
    %76 = vmatprep.subr.bf16.mxu0 0
    %77 = vmatpush2.bf16.msra.mxu0 0
    %78 = vmatprep.subr.bf16.mxu0 0
    %79 = vmatpush2.bf16.msra.mxu0 0
    %80 = vmatprep.subr.bf16.mxu0 0
    %81 = vmatpush2.bf16.msra.mxu0 0
    %82 = vmatprep.mubr.bf16.mxu0 0
    %83 = vmatmul.mubr.bf16.gmra.mxu0 %v44
    %v84 = vpop.f32.mrf.mxu0
    %v85 = vadd.f32 %v40, %v84
    %v86 = vpop.f32.mrf.mxu0
    %v87 = vpop.f32.mrf.mxu0
    %v88 = vpop.f32.mrf.mxu0
    %89 = vdwg.mxu0
    %v90 = vmul.f32 %v85, %v85
    %vm91 = vcmask 261120
    %v92 = vsel %vm91, %v90, 0.0
    %93 = vadd.xlane.f32.xlu0 %v92
    %v94 = vpop.xlane.xlu0 %93
    %v95 = vmax.f32 %v94, 1e-24
    %v96 = vrsqrt.pop %v95
    %v97 = vmul.f32 %v85, %v96
    %v98 = vadd.f32 %v97, 0.0
    %100 = vrot.lane.b32.xlu0 %v90, 96
    %v101 = vpop.permute.xlu0 %100
    %v103 = vsel %vm91, %v101, 0.0
    %104 = vadd.xlane.f32.xlu0 %v103
    %v105 = vpop.xlane.xlu0 %104
    %v106 = vmax.f32 %v105, 1e-24
    %v107 = vrsqrt.pop %v106
    %v108 = vmul.f32 %v85, %v107
    %110 = vrot.lane.b32.xlu0 %v108, 96
    %v111 = vpop.permute.xlu0 %110
    %v113 = vadd.f32 %v98, %v111
    %114 = vrot.lane.b32.xlu0 %v90, 64
    %v115 = vpop.permute.xlu0 %114
    %v117 = vsel %vm91, %v115, 0.0
    %118 = vadd.xlane.f32.xlu0 %v117
    %v119 = vpop.xlane.xlu0 %118
    %v120 = vmax.f32 %v119, 1e-24
    %v121 = vrsqrt.pop %v120
    %v122 = vmul.f32 %v85, %v121
    %124 = vrot.lane.b32.xlu0 %v122, 64
    %v125 = vpop.permute.xlu0 %124
    %v127 = vadd.f32 %v113, %v125
    %v128 = vpack.c.bf16 %v127, %v127
    %v129 = vld [vmem:[%s3] sm:$0xff]
    %v130 = vld [vmem:[%s3 + $0x8] sm:$0xff]
    %v131 = vld [vmem:[%s3 + $0x10] sm:$0xff]
    %v132 = vld [vmem:[%s3 + $0x18] sm:$0xff]
    %v133 = vpack.c.bf16 %v130, %v129
    %v134 = vpack.c.bf16 %v132, %v131
    %v135 = vld [vmem:[%s4] sm:$0x1]
    %v137 = vlaneseq
    %v138 = vshrl.u32 %v137, 7
    %v139 = vsub.s32 0, %v138
    %v140 = vrot.slane %v135, %v139
    %v143 = vsel %vm91, %v128, 0
    %145 = vmatprep.subr.bf16.mxu0 0
    %146 = vmatpush1.bf16.msra.mxu0 0
    %147 = vmatprep.subr.bf16.mxu0 0
    %148 = vmatpush1.bf16.msra.mxu0 0
    %149 = vmatprep.subr.bf16.mxu0 0
    %150 = vmatpush1.bf16.msra.mxu0 0
    %151 = vmatprep.subr.bf16.mxu0 0
    %152 = vmatpush1.bf16.msra.mxu0 0
    %153 = vmatprep.subr.bf16.mxu0 0
    %154 = vmatpush1.bf16.msra.mxu0 0
    %155 = vmatprep.subr.bf16.mxu0 0
    %156 = vmatpush1.bf16.msra.mxu0 0
    %157 = vmatprep.subr.bf16.mxu0 0
    %158 = vmatpush1.bf16.msra.mxu0 %v134
    %159 = vmatprep.subr.bf16.mxu0 0
    %160 = vmatpush1.bf16.msra.mxu0 %v133
    %161 = vmatprep.subr.bf16.mxu0 0
    %162 = vmatpush2.bf16.msra.mxu0 0
    %163 = vmatprep.subr.bf16.mxu0 0
    %164 = vmatpush2.bf16.msra.mxu0 0
    %165 = vmatprep.subr.bf16.mxu0 0
    %166 = vmatpush2.bf16.msra.mxu0 0
    %167 = vmatprep.subr.bf16.mxu0 0
    %168 = vmatpush2.bf16.msra.mxu0 0
    %169 = vmatprep.subr.bf16.mxu0 0
    %170 = vmatpush2.bf16.msra.mxu0 0
    %171 = vmatprep.subr.bf16.mxu0 0
    %172 = vmatpush2.bf16.msra.mxu0 0
    %173 = vmatprep.subr.bf16.mxu0 0
    %174 = vmatpush2.bf16.msra.mxu0 0
    %175 = vmatprep.subr.bf16.mxu0 0
    %176 = vmatpush2.bf16.msra.mxu0 0
    %177 = vmatprep.mubr.bf16.mxu0 0
    %178 = vmatmul.mubr.bf16.gmra.mxu0 %v143
    %v179 = vpop.f32.mrf.mxu0
    %v180 = vadd.f32 %v140, %v179
    %v181 = vpop.f32.mrf.mxu0
    %v182 = vpop.f32.mrf.mxu0
    %v183 = vpop.f32.mrf.mxu0
    %184 = vdwg.mxu0
    %v185 = vmax.f32 %v180, 0.0
    %v186 = vpack.c.bf16 %v185, %v185
    %v187 = vld [vmem:[%s5] sm:$0xff]
    %v188 = vld [vmem:[%s5 + $0x8] sm:$0xff]
    %v189 = vld [vmem:[%s5 + $0x10] sm:$0xff]
    %v190 = vld [vmem:[%s5 + $0x18] sm:$0xff]
    %v191 = vld [vmem:[%s5 + $0x20] sm:$0xff]
    %v192 = vld [vmem:[%s5 + $0x28] sm:$0xff]
    %v193 = vld [vmem:[%s5 + $0x30] sm:$0xff]
    %v194 = vld [vmem:[%s5 + $0x38] sm:$0xff]
    %v195 = vpack.c.bf16 %v188, %v187
    %v196 = vpack.c.bf16 %v190, %v189
    %v197 = vpack.c.bf16 %v192, %v191
    %v198 = vpack.c.bf16 %v194, %v193
    %v199 = vld [vmem:[%s6] sm:$0x1]
    %v201 = vlaneseq
    %v202 = vshrl.u32 %v201, 7
    %v203 = vsub.s32 0, %v202
    %v204 = vrot.slane %v199, %v203
    %vm206 = vcmask 523264
    %v208 = vsel %vm206, %v186, 0
    %210 = vmatprep.subr.bf16.mxu0 0
    %211 = vmatpush1.bf16.msra.mxu0 0
    %212 = vmatprep.subr.bf16.mxu0 0
    %213 = vmatpush1.bf16.msra.mxu0 0
    %214 = vmatprep.subr.bf16.mxu0 0
    %215 = vmatpush1.bf16.msra.mxu0 0
    %216 = vmatprep.subr.bf16.mxu0 0
    %217 = vmatpush1.bf16.msra.mxu0 0
    %218 = vmatprep.subr.bf16.mxu0 0
    %219 = vmatpush1.bf16.msra.mxu0 %v198
    %220 = vmatprep.subr.bf16.mxu0 0
    %221 = vmatpush1.bf16.msra.mxu0 %v197
    %222 = vmatprep.subr.bf16.mxu0 0
    %223 = vmatpush1.bf16.msra.mxu0 %v196
    %224 = vmatprep.subr.bf16.mxu0 0
    %225 = vmatpush1.bf16.msra.mxu0 %v195
    %226 = vmatprep.subr.bf16.mxu0 0
    %227 = vmatpush2.bf16.msra.mxu0 0
    %228 = vmatprep.subr.bf16.mxu0 0
    %229 = vmatpush2.bf16.msra.mxu0 0
    %230 = vmatprep.subr.bf16.mxu0 0
    %231 = vmatpush2.bf16.msra.mxu0 0
    %232 = vmatprep.subr.bf16.mxu0 0
    %233 = vmatpush2.bf16.msra.mxu0 0
    %234 = vmatprep.subr.bf16.mxu0 0
    %235 = vmatpush2.bf16.msra.mxu0 0
    %236 = vmatprep.subr.bf16.mxu0 0
    %237 = vmatpush2.bf16.msra.mxu0 0
    %238 = vmatprep.subr.bf16.mxu0 0
    %239 = vmatpush2.bf16.msra.mxu0 0
    %240 = vmatprep.subr.bf16.mxu0 0
    %241 = vmatpush2.bf16.msra.mxu0 0
    %242 = vmatprep.mubr.bf16.mxu0 0
    %243 = vmatmul.mubr.bf16.gmra.mxu0 %v208
    %v244 = vpop.f32.mrf.mxu0
    %v245 = vadd.f32 %v204, %v244
    %v246 = vpop.f32.mrf.mxu0
    %v247 = vpop.f32.mrf.mxu0
    %v248 = vpop.f32.mrf.mxu0
    %249 = vdwg.mxu0
    %vm250 = vcmask 130048
    %251 = vst.msk [vmem:[#allocation2] sm:$0xff] %vm250, %v245
    // Predicated region
    $region30: #{tpu_custom_call.1} parent=1 // pred_check
      _
    $region31: #{tpu_custom_call.1} parent=1 // pred_check_branch
      %253 = sbr.rel (0) target = $region33
    $region32: #{tpu_custom_call.1} parent=1 // pred_region
      %s255 = ssub.s32 128, 128
      %256 = vsyncadd [#allocation3], %s255
      %s258 = sshll.u32 [#allocation2], 4
      %s259 = int_to_ptr.vmem [resolvable:$true] %s258
      %261 = dma.vmem_to_hbm [thread:$0]  %s259, 128, %s7, [#allocation3]
    $region33: #{tpu_custom_call.1} parent=1 // pred_fallthru
      _
    // Predicated region
    $region34: #{tpu_custom_call.1} parent=1 // pred_check
      _
    $region35: #{tpu_custom_call.1} parent=1 // pred_check_branch
      %263 = sbr.rel (0) target = $region37
    $region36: #{tpu_custom_call.1} parent=1 // pred_region
      %264 = dma.done [#allocation3], 128
    $region37: #{tpu_custom_call.1} parent=1 // pred_fallthru
      _
    %265 = vsyncpa [#allocation3], 1

</llo_original>
